<compile_context>
chip_gen: v7x
topology: tpu7x:2x2x1
jax: 0.10.0
libtpu: 0.0.40
codegen_flags: <defaults>
</compile_context>

<pallas_src>
import functools

import jax
import jax.numpy as jnp
from jax.experimental import pallas as pl
from jax.experimental.pallas import tpu as pltpu

N_ACTIONS = 25
N_STATES = 4          # e.g. CartPole observation dim
HIDDEN = 50

LANES = 128           # lane-dense slab width

# --- packed-parameter slab row layout (all sections 8-sublane aligned) -------
K1_PAD = 8                              # fc1 contraction padded 4 -> 8
W1_START = 0                            # rows 0..3 = W1 (cols 0..49), rows 4..7 = 0
B1_ROW = 8                              # row 8 = b1, rows 9..15 = 0
WH_START = 16                           # rows 16..65 = head weights (50 rows), 66..143 = 0
WH_ROWS = 128                           # head contraction padded 50 -> 128 (aligned tile)
BH_ROW = WH_START + WH_ROWS             # row 144 = head bias, rows 145..151 = 0
P_ROWS = BH_ROW + 8                     # 152 rows total  (152 x 128 x 4B ~ 76 KB, resident)

# Head column layout: lanes 0..24 = advantage, lane 25 = value, lanes 26..127 = 0.
V_COL = N_ACTIONS


def _round_up(n, m):
    return (n + m - 1) // m * m


def _default_tb(batch):
    b8 = _round_up(batch, 8)
    if b8 <= 1024:
        # Typical DQN batch: launch-overhead bound; one grid step, no padding
        # when B is already a multiple of 8.
        return b8
    # Large replay batch: grid >= 2 (shards across both v7x TensorCores via
    # dimension_semantics=("parallel",)), tile capped so per-step VMEM stays tiny.
    return min(4096, _round_up((b8 + 1) // 2, 8))


def dueling_dqn_kernel(x_ref, p_ref, q_ref):
    """x_ref: (tb, N_STATES) f32, p_ref: (P_ROWS, 128) f32, q_ref: (tb, N_ACTIONS) f32."""
    x = x_ref[...]                                            # (tb, 4)
    tb = x.shape[0]

    # ---- fc1 on the MXU: pad the K=4 contraction to 8 with zero lanes ----
    xp = jnp.concatenate(
        [x, jnp.zeros((tb, K1_PAD - N_STATES), x.dtype)], axis=1)        # (tb, 8)
    w1 = p_ref[W1_START:W1_START + K1_PAD, :]                            # (8, 128), rows 4..7 = 0
    b1 = p_ref[B1_ROW:B1_ROW + 1, :]                                     # (1, 128)
    h = jnp.maximum(
        jnp.dot(xp, w1, preferred_element_type=jnp.float32) + b1, 0.0)   # (tb, 128)
    # Lanes 50..127 of h are exactly 0 (zero weight/bias padding, relu(0)=0).

    # ---- fused value|advantage head: one aligned (tb,128)x(128,128) matmul ----
    w_head = p_ref[WH_START:WH_START + WH_ROWS, :]                       # (128, 128)
    b_head = p_ref[BH_ROW:BH_ROW + 1, :]                                 # (1, 128)
    out = jnp.dot(h, w_head, preferred_element_type=jnp.float32) + b_head
    # out lanes 0..24 = advantage, lane 25 = value, lanes 26..127 = exactly 0
    # (zero-padding invariant maintained by pack_params).

    # ---- dueling combine: Q = A + (V - mean(A)) ----
    # Full-vreg XLU reduce over all 128 lanes; padding lanes are zero so
    # sum(A) = s - V.  Avoids any unaligned lane slice before the reduce.
    s = jnp.sum(out, axis=1, keepdims=True)                              # (tb, 1) = sum(A) + V
    v = out[:, V_COL:V_COL + 1]                                          # (tb, 1) = V
    v_shift = v - (s - v) * (1.0 / N_ACTIONS)                            # V - mean(A)
    q_full = out + v_shift                                               # full-vreg VPU add

    # Lane-0-aligned slice of the Q columns; output block is exactly (tb, 25).
    q_ref[...] = q_full[:, :N_ACTIONS]


def pack_params(params):
    """Pack all weights/biases into one (P_ROWS, 128) f32 slab.

    Row layout (every section starts on an 8-sublane boundary):
      rows [0, 4)      : W1   (stored (in, out)) at cols 0..49
      row  8           : b1   at cols 0..49
      rows [16, 66)    : fused head weights: cols 0..24 = Wa, col 25 = Wv
      row  144         : fused head bias:    cols 0..24 = ba, col 25 = bv
    All other rows/cols are zero.  The zero padding beyond col 25 of the head
    section is REQUIRED by the in-kernel full-lane-sum dueling combine.
    """
    slab = jnp.zeros((P_ROWS, LANES), jnp.float32)
    slab = slab.at[W1_START:W1_START + N_STATES, 0:HIDDEN].set(params["w1"])
    slab = slab.at[B1_ROW, 0:HIDDEN].set(params["b1"].reshape(HIDDEN))
    w_head = jnp.concatenate([params["wa"], params["wv"]], axis=1)       # (50, 26)
    b_head = jnp.concatenate([params["ba"], params["bv"]], axis=1)       # (1, 26)
    slab = slab.at[WH_START:WH_START + HIDDEN, 0:N_ACTIONS + 1].set(w_head)
    slab = slab.at[BH_ROW, 0:N_ACTIONS + 1].set(b_head.reshape(-1))
    return slab


@functools.partial(jax.jit, static_argnames=("tb",))
def dueling_dqn_forward(x, packed, tb=None):
    """x: (B, N_STATES) f32, packed: (P_ROWS, 128) f32 from pack_params -> (B, N_ACTIONS)."""
    B = x.shape[0]
    if tb is None:
        tb = _default_tb(B)
    b_pad = _round_up(B, tb)
    x_in = x if b_pad == B else jnp.pad(x, ((0, b_pad - B), (0, 0)))

    flops = 2 * b_pad * (K1_PAD * HIDDEN + HIDDEN * (N_ACTIONS + 1))
    bytes_accessed = 4 * (b_pad * N_STATES + P_ROWS * LANES + b_pad * N_ACTIONS)

    q = pl.pallas_call(
        dueling_dqn_kernel,
        out_shape=jax.ShapeDtypeStruct((b_pad, N_ACTIONS), jnp.float32),
        grid=(b_pad // tb,),
        in_specs=[
            pl.BlockSpec((tb, N_STATES), lambda i: (i, 0)),      # x: streamed over batch
            pl.BlockSpec((P_ROWS, LANES), lambda i: (0, 0)),     # params: resident
        ],
        out_specs=pl.BlockSpec((tb, N_ACTIONS), lambda i: (i, 0)),
        compiler_params=pltpu.CompilerParams(
            dimension_semantics=("parallel",)),
        cost_estimate=pl.CostEstimate(
            flops=flops, transcendentals=0, bytes_accessed=bytes_accessed),
    )(x_in, packed)

    return q if b_pad == B else q[:B]


def init_params(key):
    """Mirror the PyTorch module: weights ~ N(0, 0.1); biases zero.
    Weights stored pre-transposed as (in_features, out_features)."""
    k1, k2, k3 = jax.random.split(key, 3)
    w1 = 0.1 * jax.random.normal(k1, (N_STATES, HIDDEN), jnp.float32)
    wv = 0.1 * jax.random.normal(k2, (HIDDEN, 1), jnp.float32)
    wa = 0.1 * jax.random.normal(k3, (HIDDEN, N_ACTIONS), jnp.float32)
    return {
        "w1": w1, "b1": jnp.zeros((1, HIDDEN), jnp.float32),
        "wv": wv, "bv": jnp.zeros((1, 1), jnp.float32),
        "wa": wa, "ba": jnp.zeros((1, N_ACTIONS), jnp.float32),
    }


def reference_forward(x, p):
    h = jnp.maximum(x @ p["w1"] + p["b1"], 0.0)
    v = h @ p["wv"] + p["bv"]
    a = h @ p["wa"] + p["ba"]
    return v + a - jnp.mean(a, axis=1, keepdims=True)


if __name__ == "__main__":
    key = jax.random.PRNGKey(0)
    kx, kx2, kp = jax.random.split(key, 3)

    params = init_params(kp)
    packed = pack_params(params)

    # Small example batch: single grid step, no padding, no post-kernel slicing.
    B = 8
    x = jax.random.normal(kx, (B, N_STATES), jnp.float32)
    q = jax.block_until_ready(dueling_dqn_forward(x, packed))
    q_ref = reference_forward(x, params)
    assert q.shape == (B, N_ACTIONS)
    assert jnp.allclose(q, q_ref, atol=1e-5, rtol=1e-5), "mismatch vs reference (B=8)"

    # Exercise the batch-tiled path (grid > 1, ragged batch -> pad + row slice).
    B2 = 20
    x2 = jax.random.normal(kx2, (B2, N_STATES), jnp.float32)
    q2 = jax.block_until_ready(dueling_dqn_forward(x2, packed, tb=8))
    q2_ref = reference_forward(x2, params)
    assert q2.shape == (B2, N_ACTIONS)
    assert jnp.allclose(q2, q2_ref, atol=1e-5, rtol=1e-5), "mismatch vs reference (B=20)"

    print("KERNEL_OK")
</pallas_src>

<mosaic_0001>
module attributes {stable_mosaic.version = 11 : i64} {
  func.func @dueling_dqn_kernel(%arg0: i32, %arg1: memref<8x4xf32, #tpu.memory_space<vmem>>, %arg2: memref<152x128xf32, #tpu.memory_space<vmem>>, %arg3: memref<8x25xf32, #tpu.memory_space<vmem>>) attributes {dimension_semantics = [#tpu.dimension_semantics<parallel>], iteration_bounds = array<i64: 1>, scalar_prefetch = 0 : i64, scratch_operands = 0 : i64, tpu.core_type = #tpu.core_type<tc>, window_params = [{transform_indices = @transform_0, window_bounds = array<i64: 8, 4>}, {pipeline_mode = #tpu.pipeline_mode<synchronous>, transform_indices = @transform_1, window_bounds = array<i64: 152, 128>}, {transform_indices = @transform_2, window_bounds = array<i64: 8, 25>}]} {
    %c0 = arith.constant 0 : index
    %c0_0 = arith.constant 0 : index
    %0 = vector.load %arg1[%c0, %c0_0] : memref<8x4xf32, #tpu.memory_space<vmem>>, vector<8x4xf32>
    %cst = arith.constant 0.000000e+00 : f32
    %1 = vector.broadcast %cst : f32 to vector<8x4xf32>
    %2 = tpu.concatenate %0, %1 in 1 : vector<8x4xf32>, vector<8x4xf32> -> vector<8x8xf32>
    %c0_1 = arith.constant 0 : index
    %c0_2 = arith.constant 0 : index
    %3 = vector.load %arg2[%c0_1, %c0_2] : memref<152x128xf32, #tpu.memory_space<vmem>>, vector<8x128xf32>
    %c8 = arith.constant 8 : index
    %c0_3 = arith.constant 0 : index
    %4 = vector.load %arg2[%c8, %c0_3] : memref<152x128xf32, #tpu.memory_space<vmem>>, vector<1x128xf32>
    %cst_4 = arith.constant dense<0.000000e+00> : vector<8x128xf32>
    %5 = tpu.matmul %2, %3, %cst_4 {dimension_numbers = #tpu.dot_dimension_numbers<[1], [0], [0], [1], [0, 0, 1, 1], [], []>} : vector<8x8xf32>, vector<8x128xf32>, vector<8x128xf32> -> vector<8x128xf32>
    %6 = vector.broadcast %4 : vector<1x128xf32> to vector<8x128xf32>
    %7 = arith.addf %5, %6 : vector<8x128xf32>
    %cst_5 = arith.constant 0.000000e+00 : f32
    %8 = vector.broadcast %cst_5 : f32 to vector<8x128xf32>
    %9 = arith.maximumf %7, %8 : vector<8x128xf32>
    %c16 = arith.constant 16 : index
    %c0_6 = arith.constant 0 : index
    %10 = vector.load %arg2[%c16, %c0_6] : memref<152x128xf32, #tpu.memory_space<vmem>>, vector<128x128xf32>
    %c144 = arith.constant 144 : index
    %c0_7 = arith.constant 0 : index
    %11 = vector.load %arg2[%c144, %c0_7] : memref<152x128xf32, #tpu.memory_space<vmem>>, vector<1x128xf32>
    %cst_8 = arith.constant dense<0.000000e+00> : vector<8x128xf32>
    %12 = tpu.matmul %9, %10, %cst_8 {dimension_numbers = #tpu.dot_dimension_numbers<[1], [0], [0], [1], [0, 0, 1, 1], [], []>} : vector<8x128xf32>, vector<128x128xf32>, vector<8x128xf32> -> vector<8x128xf32>
    %13 = vector.broadcast %11 : vector<1x128xf32> to vector<8x128xf32>
    %14 = arith.addf %12, %13 : vector<8x128xf32>
    %cst_9 = arith.constant dense<0.000000e+00> : vector<8xf32>
    %15 = vector.multi_reduction <add>, %14, %cst_9 [1] : vector<8x128xf32> to vector<8xf32>
    %16 = vector.shape_cast %15 : vector<8xf32> to vector<8x1xf32>
    %17 = vector.extract_strided_slice %14 {offsets = [0, 25], sizes = [8, 1], strides = [1, 1]} : vector<8x128xf32> to vector<8x1xf32>
    %18 = arith.subf %16, %17 : vector<8x1xf32>
    %cst_10 = arith.constant 4.000000e-02 : f32
    %19 = vector.broadcast %cst_10 : f32 to vector<8x1xf32>
    %20 = arith.mulf %18, %19 : vector<8x1xf32>
    %21 = arith.subf %17, %20 : vector<8x1xf32>
    %22 = vector.broadcast %21 : vector<8x1xf32> to vector<8x128xf32>
    %23 = arith.addf %14, %22 : vector<8x128xf32>
    %24 = vector.extract_strided_slice %23 {offsets = [0, 0], sizes = [8, 25], strides = [1, 1]} : vector<8x128xf32> to vector<8x25xf32>
    %c0_11 = arith.constant 0 : index
    %c0_12 = arith.constant 0 : index
    %25 = vector.load %arg3[%c0_11, %c0_12] : memref<8x25xf32, #tpu.memory_space<vmem>>, vector<8x25xf32>
    tpu.vector_store %arg3[%c0_11, %c0_12], %24 {strides = array<i32>} : memref<8x25xf32, #tpu.memory_space<vmem>>, vector<8x25xf32>,
    return
  }
  func.func @transform_0(%arg0: i32) -> (i32, i32) {
    %c0_i32 = arith.constant 0 : i32
    %c0_i32_0 = arith.constant 0 : i32
    return %arg0, %c0_i32 : i32, i32
  }
  func.func @transform_1(%arg0: i32) -> (i32, i32) {
    %c0_i32 = arith.constant 0 : i32
    %c0_i32_0 = arith.constant 0 : i32
    %c0_i32_1 = arith.constant 0 : i32
    return %c0_i32, %c0_i32_0 : i32, i32
  }
  func.func @transform_2(%arg0: i32) -> (i32, i32) {
    %c0_i32 = arith.constant 0 : i32
    %c0_i32_0 = arith.constant 0 : i32
    return %arg0, %c0_i32 : i32, i32
  }
}

</mosaic_0001>

<llo_original>
// kernel: dueling_dqn_forward.1
$region0: #{dueling_dqn_forward.1}
  #allocation0 [shape = 'u32[]', space=smem, size = 0x4, offset = 0x4, fixed_abs, tag = 'smem constant byte address 0x4 - core index']
  #allocation1 [shape = 'u32[144,128]{1,0:T(1,128)}', space=vmem, size = 0x12000, scoped, tag = 'internal scratch']
  %s0 = inlined_call_operand.vmem [shape: f32[8,4], index: 0, kind: input, shape index: {}]
  %s1 = inlined_call_operand.hbm [shape: f32[152,128], index: 1, kind: input, shape index: {}]
  %s2 = inlined_call_operand.hbm [shape: f32[8,25], index: 2, kind: output, shape index: {}]
  %s3 = sld [smem:[#allocation0]]
  $region22: #{dueling_dqn_forward.1} parent=0
    _
  %s5 = ssub.s32 1, %s3
  %s6 = scalar_select 0, %s5, %s3
  $region1: #{dueling_dqn_forward.1} parent=0
    #allocation2 [shape = 'u8[77824]{0}', space=vmem, size = 0x13000, scoped, tag = 'input window, operand 1, single buffered']
    #allocation3 [shape = 's32[1]{0}', space=sflag, size = 0x4, scoped, tag = 'scoped memory for dueling_dqn_forward.1']
    #allocation4 [shape = 's32[1]{0}', space=sflag, size = 0x4, scoped, tag = 'scoped memory for dueling_dqn_forward.1']
    #allocation5 [shape = 'u8[4096]{0}', space=vmem, size = 0x1000, scoped, tag = 'output window, operand 0, single buffered']
    %7 = vsyncpa [#allocation3], 0
    %8 = vsyncpa [#allocation4], 0
    // Predicated region
    $region2: #{dueling_dqn_forward.1} parent=1 // pred_check
      _
    $region3: #{dueling_dqn_forward.1} parent=1 // pred_check_branch
      %10 = sbr.rel (0) target = $region5
    $region4: #{dueling_dqn_forward.1} parent=1 // pred_region
      _
    $region5: #{dueling_dqn_forward.1} parent=1 // pred_fallthru
      _
    // Predicated region
    $region6: #{dueling_dqn_forward.1} parent=1 // pred_check
      _
    $region7: #{dueling_dqn_forward.1} parent=1 // pred_check_branch
      %12 = sbr.rel (0) target = $region9
    $region8: #{dueling_dqn_forward.1} parent=1 // pred_region
      %s14 = ssub.s32 2432, 2432
      %15 = vsyncadd [#allocation3], %s14
      %s16 = sshll.u32 [#allocation2], 4
      %s17 = int_to_ptr.vmem [resolvable:$true] %s16
      %22 = dma.hbm_to_vmem [thread:$0]  %s1, 2432, %s17, [#allocation3], 128, 128, 8
    $region9: #{dueling_dqn_forward.1} parent=1 // pred_fallthru
      _
    // Predicated region
    $region10: #{dueling_dqn_forward.1} parent=1 // pred_check
      _
    $region11: #{dueling_dqn_forward.1} parent=1 // pred_check_branch
      %24 = sbr.rel (0) target = $region13
    $region12: #{dueling_dqn_forward.1} parent=1 // pred_region
      %25 = dma.done [#allocation3], 2432
    $region13: #{dueling_dqn_forward.1} parent=1 // pred_fallthru
      _
    %v26 = vld [vmem:[%s0] sm:$0xff]
    %vm27 = vcmask 31744
    %v28 = vsel %vm27, %v26, 0.0
    %v29 = vld [vmem:[#allocation2] sm:$0xff]
    %v30 = vld [vmem:[#allocation2 + $0x8] sm:$0x1]
    %v31 = vlaneseq
    %v32 = vshrl.u32 %v31, 7
    %v33 = vsub.s32 0, %v32
    %v34 = vrot.slane %v30, %v33
    %vm35 = vcmask 64512
    %v37 = vsel %vm35, %v28, 0
    %39 = vmatprep.subr.mxu0 0.0
    %40 = vmatpush1.msra.mxu0 %v29
    %41 = vmatprep.subr.mxu0 0.0
    %42 = vmatpush1.msra.mxu0 0.0
    %43 = vmatprep.subr.mxu0 0.0
    %44 = vmatpush1.msra.mxu0 0.0
    %45 = vmatprep.subr.mxu0 0.0
    %46 = vmatpush1.msra.mxu0 0.0
    %47 = vmatprep.subr.mxu0 0.0
    %48 = vmatpush1.msra.mxu0 0.0
    %49 = vmatprep.subr.mxu0 0.0
    %50 = vmatpush1.msra.mxu0 0.0
    %51 = vmatprep.subr.mxu0 0.0
    %52 = vmatpush1.msra.mxu0 0.0
    %53 = vmatprep.subr.mxu0 0.0
    %54 = vmatpush1.msra.mxu0 0.0
    %55 = vmatprep.subr.mxu0 0.0
    %56 = vmatpush1.msra.mxu0 0.0
    %57 = vmatprep.subr.mxu0 0.0
    %58 = vmatpush1.msra.mxu0 0.0
    %59 = vmatprep.subr.mxu0 0.0
    %60 = vmatpush1.msra.mxu0 0.0
    %61 = vmatprep.subr.mxu0 0.0
    %62 = vmatpush1.msra.mxu0 0.0
    %63 = vmatprep.subr.mxu0 0.0
    %64 = vmatpush1.msra.mxu0 0.0
    %65 = vmatprep.subr.mxu0 0.0
    %66 = vmatpush1.msra.mxu0 0.0
    %67 = vmatprep.subr.mxu0 0.0
    %68 = vmatpush1.msra.mxu0 0.0
    %69 = vmatprep.subr.mxu0 0.0
    %70 = vmatpush1.msra.mxu0 0.0
    %71 = vmatprep.subr.mxu0 0.0
    %72 = vmatpush1.msra.mxu0 0.0
    %73 = vmatprep.subr.mxu0 0.0
    %74 = vmatpush1.msra.mxu0 0.0
    %75 = vmatprep.subr.mxu0 0.0
    %76 = vmatpush1.msra.mxu0 0.0
    %77 = vmatprep.subr.mxu0 0.0
    %78 = vmatpush1.msra.mxu0 0.0
    %79 = vmatprep.subr.mxu0 0.0
    %80 = vmatpush1.msra.mxu0 0.0
    %81 = vmatprep.subr.mxu0 0.0
    %82 = vmatpush1.msra.mxu0 0.0
    %83 = vmatprep.subr.mxu0 0.0
    %84 = vmatpush1.msra.mxu0 0.0
    %85 = vmatprep.subr.mxu0 0.0
    %86 = vmatpush1.msra.mxu0 0.0
    %87 = vmatprep.subr.mxu0 0.0
    %88 = vmatpush1.msra.mxu0 0.0
    %89 = vmatprep.subr.mxu0 0.0
    %90 = vmatpush1.msra.mxu0 0.0
    %91 = vmatprep.subr.mxu0 0.0
    %92 = vmatpush1.msra.mxu0 0.0
    %93 = vmatprep.subr.mxu0 0.0
    %94 = vmatpush1.msra.mxu0 0.0
    %95 = vmatprep.subr.mxu0 0.0
    %96 = vmatpush1.msra.mxu0 0.0
    %97 = vmatprep.subr.mxu0 0.0
    %98 = vmatpush1.msra.mxu0 0.0
    %99 = vmatprep.subr.mxu0 0.0
    %100 = vmatpush1.msra.mxu0 0.0
    %101 = vmatprep.subr.mxu0 0.0
    %102 = vmatpush1.msra.mxu0 0.0
    %103 = vmatprep.mubr.f32.mxu0 0.0
    %104 = vmatmul.mubr.f32.gmra.mrb[0].mxu0 %v37
    %v105 = vpop.f32.mrb[0].mxu0
    %v106 = vadd.f32 %v34, %v105
    %v107 = vpop.f32.mrb[0].mxu0
    %108 = vdwg.mxu0
    %v109 = vmax.f32 %v106, 0.0
    %v110 = vld [vmem:[#allocation2 + $0x10] sm:$0xff]
    %v111 = vld [vmem:[#allocation2 + $0x18] sm:$0xff]
    %v112 = vld [vmem:[#allocation2 + $0x20] sm:$0xff]
    %v113 = vld [vmem:[#allocation2 + $0x28] sm:$0xff]
    %v114 = vld [vmem:[#allocation2 + $0x30] sm:$0xff]
    %v115 = vld [vmem:[#allocation2 + $0x38] sm:$0xff]
    %v116 = vld [vmem:[#allocation2 + $0x40] sm:$0xff]
    %v117 = vld [vmem:[#allocation2 + $0x48] sm:$0xff]
    %v118 = vld [vmem:[#allocation2 + $0x50] sm:$0xff]
    %v119 = vld [vmem:[#allocation2 + $0x58] sm:$0xff]
    %v120 = vld [vmem:[#allocation2 + $0x60] sm:$0xff]
    %v121 = vld [vmem:[#allocation2 + $0x68] sm:$0xff]
    %v122 = vld [vmem:[#allocation2 + $0x70] sm:$0xff]
    %v123 = vld [vmem:[#allocation2 + $0x78] sm:$0xff]
    %v124 = vld [vmem:[#allocation2 + $0x80] sm:$0xff]
    %v125 = vld [vmem:[#allocation2 + $0x88] sm:$0xff]
    %v126 = vld [vmem:[#allocation2 + $0x90] sm:$0x1]
    %v127 = vlaneseq
    %v128 = vshrl.u32 %v127, 7
    %v129 = vsub.s32 0, %v128
    %v130 = vrot.slane %v126, %v129
    %131 = vmatprep.subr.mxu0 0.0
    %132 = vmatpush1.msra.mxu0 %v110
    %133 = vmatprep.subr.mxu0 0.0
    %134 = vmatpush1.msra.mxu0 %v111
    %135 = vmatprep.subr.mxu0 0.0
    %136 = vmatpush1.msra.mxu0 %v112
    %137 = vmatprep.subr.mxu0 0.0
    %138 = vmatpush1.msra.mxu0 %v113
    %139 = vmatprep.subr.mxu0 0.0
    %140 = vmatpush1.msra.mxu0 %v114
    %141 = vmatprep.subr.mxu0 0.0
    %142 = vmatpush1.msra.mxu0 %v115
    %143 = vmatprep.subr.mxu0 0.0
    %144 = vmatpush1.msra.mxu0 %v116
    %145 = vmatprep.subr.mxu0 0.0
    %146 = vmatpush1.msra.mxu0 %v117
    %147 = vmatprep.subr.mxu0 0.0
    %148 = vmatpush1.msra.mxu0 %v118
    %149 = vmatprep.subr.mxu0 0.0
    %150 = vmatpush1.msra.mxu0 %v119
    %151 = vmatprep.subr.mxu0 0.0
    %152 = vmatpush1.msra.mxu0 %v120
    %153 = vmatprep.subr.mxu0 0.0
    %154 = vmatpush1.msra.mxu0 %v121
    %155 = vmatprep.subr.mxu0 0.0
    %156 = vmatpush1.msra.mxu0 %v122
    %157 = vmatprep.subr.mxu0 0.0
    %158 = vmatpush1.msra.mxu0 %v123
    %159 = vmatprep.subr.mxu0 0.0
    %160 = vmatpush1.msra.mxu0 %v124
    %161 = vmatprep.subr.mxu0 0.0
    %162 = vmatpush1.msra.mxu0 %v125
    %163 = vmatprep.subr.mxu0 0.0
    %164 = vmatpush1.msra.mxu0 0.0
    %165 = vmatprep.subr.mxu0 0.0
    %166 = vmatpush1.msra.mxu0 0.0
    %167 = vmatprep.subr.mxu0 0.0
    %168 = vmatpush1.msra.mxu0 0.0
    %169 = vmatprep.subr.mxu0 0.0
    %170 = vmatpush1.msra.mxu0 0.0
    %171 = vmatprep.subr.mxu0 0.0
    %172 = vmatpush1.msra.mxu0 0.0
    %173 = vmatprep.subr.mxu0 0.0
    %174 = vmatpush1.msra.mxu0 0.0
    %175 = vmatprep.subr.mxu0 0.0
    %176 = vmatpush1.msra.mxu0 0.0
    %177 = vmatprep.subr.mxu0 0.0
    %178 = vmatpush1.msra.mxu0 0.0
    %179 = vmatprep.subr.mxu0 0.0
    %180 = vmatpush1.msra.mxu0 0.0
    %181 = vmatprep.subr.mxu0 0.0
    %182 = vmatpush1.msra.mxu0 0.0
    %183 = vmatprep.subr.mxu0 0.0
    %184 = vmatpush1.msra.mxu0 0.0
    %185 = vmatprep.subr.mxu0 0.0
    %186 = vmatpush1.msra.mxu0 0.0
    %187 = vmatprep.subr.mxu0 0.0
    %188 = vmatpush1.msra.mxu0 0.0
    %189 = vmatprep.subr.mxu0 0.0
    %190 = vmatpush1.msra.mxu0 0.0
    %191 = vmatprep.subr.mxu0 0.0
    %192 = vmatpush1.msra.mxu0 0.0
    %193 = vmatprep.subr.mxu0 0.0
    %194 = vmatpush1.msra.mxu0 0.0
    %195 = vmatprep.mubr.f32.mxu0 0.0
    %196 = vmatmul.mubr.f32.gmra.mrb[0].mxu0 %v109
    %v197 = vpop.f32.mrb[0].mxu0
    %v198 = vadd.f32 %v130, %v197
    %v199 = vpop.f32.mrb[0].mxu0
    %200 = vdwg.mxu0
    %201 = vadd.xlane.f32.xlu0 %v198
    %v202 = vpop.xlane.xlu0 %201
    %v203 = vsub.f32 %v202, %v198
    %v204 = vmul.f32 %v203, 0.04
    %v205 = vsub.f32 %v198, %v204
    %207 = vset.pattern.permute.xlu0 25
    %208 = vperm.xlu0 %207, %v205
    %v209 = vpop.permute.xlu0 %208
    %v211 = vadd.f32 %v198, %v209
    %vm212 = vcmask 203776
    %213 = vst.msk [vmem:[#allocation5] sm:$0xff] %vm212, %v211
    // Predicated region
    $region14: #{dueling_dqn_forward.1} parent=1 // pred_check
      _
    $region15: #{dueling_dqn_forward.1} parent=1 // pred_check_branch
      %215 = sbr.rel (0) target = $region17
    $region16: #{dueling_dqn_forward.1} parent=1 // pred_region
      %s217 = ssub.s32 128, 128
      %218 = vsyncadd [#allocation4], %s217
      %s220 = sshll.u32 [#allocation5], 4
      %s221 = int_to_ptr.vmem [resolvable:$true] %s220
      %223 = dma.vmem_to_hbm [thread:$0]  %s221, 128, %s2, [#allocation4]
    $region17: #{dueling_dqn_forward.1} parent=1 // pred_fallthru
      _
    // Predicated region
    $region18: #{dueling_dqn_forward.1} parent=1 // pred_check
      _
    $region19: #{dueling_dqn_forward.1} parent=1 // pred_check_branch
      %225 = sbr.rel (0) target = $region21
    $region20: #{dueling_dqn_forward.1} parent=1 // pred_region
      %226 = dma.done [#allocation4], 128
    $region21: #{dueling_dqn_forward.1} parent=1 // pred_fallthru
      _
    %227 = vsyncpa [#allocation3], 1
    %228 = vsyncpa [#allocation4], 1

</llo_original>
